<compile_context>
chip_gen: v7x
topology: tpu7x:2x2x1
jax: 0.10.0
libtpu: 0.0.40
codegen_flags: <defaults>
</compile_context>

<pallas_src>
import math
import jax
import jax.numpy as jnp
from jax.experimental import pallas as pl
from jax.experimental.pallas import tpu as pltpu


def _linear_sigmoid_softmax_kernel(x_ref, wt_ref, b_ref, o_ref):
    # x: (B, F_in), wt: (F_in, F_out) canonical MXU layout, b: (1, F_out)
    y = jnp.dot(x_ref[...], wt_ref[...], preferred_element_type=jnp.float32)
    y = y + b_ref[...]
    # Sigmoid (EUP exp path); output bounded in (0, 1)
    y = jax.nn.sigmoid(y)
    # Softmax over dim=0 (batch axis). No max-subtraction needed: y in (0,1)
    # so exp(y) <= e, numerically safe.
    e = jnp.exp(y)
    denom = jnp.sum(e, axis=0, keepdims=True)
    o_ref[...] = (e * pl.reciprocal(denom, approx=False)).astype(o_ref.dtype)


def linear_sigmoid_softmax(x, w, b):
    """x: (B, F_in) f32, w: (F_out, F_in) f32 (nn.Linear layout), b: (F_out,) f32."""
    B, F_in = x.shape
    F_out, _ = w.shape
    # One-time layout fixups OUTSIDE the kernel (XLA ops at the boundary):
    w_t = w.T                  # (F_in, F_out): K on RHS sublanes for the MXU
    b2d = b.reshape(1, F_out)

    cost = pl.CostEstimate(
        flops=2 * B * F_in * F_out,
        transcendentals=2 * B * F_out,          # sigmoid-exp + softmax-exp
        bytes_accessed=4 * (B * F_in + F_in * F_out + F_out + 2 * B * F_out),
    )

    return pl.pallas_call(
        _linear_sigmoid_softmax_kernel,
        out_shape=jax.ShapeDtypeStruct((B, F_out), jnp.float32),
        in_specs=[
            pl.BlockSpec(memory_space=pltpu.MemorySpace.VMEM),
            pl.BlockSpec(memory_space=pltpu.MemorySpace.VMEM),
            pl.BlockSpec(memory_space=pltpu.MemorySpace.VMEM),
        ],
        out_specs=pl.BlockSpec(memory_space=pltpu.MemorySpace.VMEM),
        cost_estimate=cost,
    )(x, w_t, b2d)


def reference(x, w, b):
    y = x @ w.T + b.reshape(1, -1)
    y = jax.nn.sigmoid(y)
    return jax.nn.softmax(y, axis=0)


if __name__ == "__main__":
    in_features, out_features = 1536, 10
    batch = 5

    key = jax.random.PRNGKey(0)
    kx, kw, kb = jax.random.split(key, 3)

    # Input like torch.randn(5, 1536)
    x = jax.random.normal(kx, (batch, in_features), dtype=jnp.float32)

    # Deterministic param init mimicking torch.nn.Linear default:
    # uniform(-1/sqrt(fan_in), 1/sqrt(fan_in))
    bound = 1.0 / math.sqrt(in_features)
    w = jax.random.uniform(kw, (out_features, in_features),
                           minval=-bound, maxval=bound, dtype=jnp.float32)
    b = jax.random.uniform(kb, (out_features,),
                           minval=-bound, maxval=bound, dtype=jnp.float32)

    fn = jax.jit(linear_sigmoid_softmax)
    out = fn(x, w, b)
    out = jax.block_until_ready(out)

    ref = reference(x, w, b)
    assert out.shape == (batch, out_features)
    assert jnp.allclose(out, ref, atol=1e-5, rtol=1e-5), "mismatch vs reference"
    # softmax over dim=0: each column sums to 1
    assert jnp.allclose(jnp.sum(out, axis=0), jnp.ones(out_features), atol=1e-5)

    print("KERNEL_OK")
</pallas_src>

<mosaic_0001>
module attributes {stable_mosaic.version = 11 : i64} {
  func.func @_linear_sigmoid_softmax_kernel(%arg0: memref<5x1536xf32, #tpu.memory_space<vmem>>, %arg1: memref<1536x10xf32, #tpu.memory_space<vmem>>, %arg2: memref<1x10xf32, #tpu.memory_space<vmem>>, %arg3: memref<5x10xf32, #tpu.memory_space<vmem>>) attributes {dimension_semantics = [], scalar_prefetch = 0 : i64, scratch_operands = 0 : i64, tpu.core_type = #tpu.core_type<tc>} {
    %c0 = arith.constant 0 : index
    %c0_0 = arith.constant 0 : index
    %0 = vector.load %arg0[%c0, %c0_0] : memref<5x1536xf32, #tpu.memory_space<vmem>>, vector<5x1536xf32>
    %c0_1 = arith.constant 0 : index
    %c0_2 = arith.constant 0 : index
    %1 = vector.load %arg1[%c0_1, %c0_2] : memref<1536x10xf32, #tpu.memory_space<vmem>>, vector<1536x10xf32>
    %cst = arith.constant dense<0.000000e+00> : vector<5x10xf32>
    %2 = tpu.matmul %0, %1, %cst {dimension_numbers = #tpu.dot_dimension_numbers<[1], [0], [0], [1], [0, 0, 1, 1], [], []>} : vector<5x1536xf32>, vector<1536x10xf32>, vector<5x10xf32> -> vector<5x10xf32>
    %c0_3 = arith.constant 0 : index
    %c0_4 = arith.constant 0 : index
    %3 = vector.load %arg2[%c0_3, %c0_4] : memref<1x10xf32, #tpu.memory_space<vmem>>, vector<1x10xf32>
    %4 = vector.broadcast %3 : vector<1x10xf32> to vector<5x10xf32>
    %5 = arith.addf %2, %4 : vector<5x10xf32>
    %6 = arith.negf %5 : vector<5x10xf32>
    %7 = math.exp %6 : vector<5x10xf32>
    %cst_5 = arith.constant 1.000000e+00 : f32
    %8 = vector.broadcast %cst_5 : f32 to vector<5x10xf32>
    %9 = arith.addf %8, %7 : vector<5x10xf32>
    %10 = arith.divf %8, %9 : vector<5x10xf32>
    %11 = math.exp %10 : vector<5x10xf32>
    %cst_6 = arith.constant dense<0.000000e+00> : vector<10xf32>
    %12 = vector.multi_reduction <add>, %11, %cst_6 [0] : vector<5x10xf32> to vector<10xf32>
    %13 = vector.shape_cast %12 : vector<10xf32> to vector<1x10xf32>
    %14 = tpu.reciprocal %13 : vector<1x10xf32> -> vector<1x10xf32>
    %15 = vector.broadcast %14 : vector<1x10xf32> to vector<5x10xf32>
    %16 = arith.mulf %11, %15 : vector<5x10xf32>
    %c0_7 = arith.constant 0 : index
    %c0_8 = arith.constant 0 : index
    %17 = vector.load %arg3[%c0_7, %c0_8] : memref<5x10xf32, #tpu.memory_space<vmem>>, vector<5x10xf32>
    tpu.vector_store %arg3[%c0_7, %c0_8], %16 {strides = array<i32>} : memref<5x10xf32, #tpu.memory_space<vmem>>, vector<5x10xf32>,
    return
  }
}

</mosaic_0001>

<llo_original>
// kernel: linear_sigmoid_softmax.1
$region0: #{linear_sigmoid_softmax.1}
  #allocation0 [shape = 'u32[]', space=smem, size = 0x4, offset = 0x4, fixed_abs, tag = 'smem constant byte address 0x4 - core index']
  #allocation1 [shape = 'u32[144,128]{1,0:T(1,128)}', space=vmem, size = 0x12000, scoped, tag = 'internal scratch']
  %s0 = inlined_call_operand.vmem [shape: f32[5,1536], index: 0, kind: input, shape index: {}]
  %s1 = inlined_call_operand.vmem [shape: f32[1536,10], index: 1, kind: input, shape index: {}]
  %s2 = inlined_call_operand.vmem [shape: f32[1,10], index: 2, kind: input, shape index: {}]
  %s3 = inlined_call_operand.hbm [shape: f32[5,10], index: 3, kind: output, shape index: {}]
  %s4 = sld [smem:[#allocation0]]
  $region22: #{linear_sigmoid_softmax.1} parent=0
    _
  %s6 = ssub.s32 1, %s4
  %s7 = scalar_select 0, %s6, %s4
  $region1: #{linear_sigmoid_softmax.1} parent=0
    #allocation2 [shape = 'u8[4096]{0}', space=vmem, size = 0x1000, scoped, tag = 'output window, operand 0, single buffered']
    #allocation3 [shape = 's32[1]{0}', space=sflag, size = 0x4, scoped, tag = 'scoped memory for linear_sigmoid_softmax.1']
    %8 = vsyncpa [#allocation3], 0
    // Predicated region
    $region2: #{linear_sigmoid_softmax.1} parent=1 // pred_check
      _
    $region3: #{linear_sigmoid_softmax.1} parent=1 // pred_check_branch
      %10 = sbr.rel (0) target = $region5
    $region4: #{linear_sigmoid_softmax.1} parent=1 // pred_region
      _
    $region5: #{linear_sigmoid_softmax.1} parent=1 // pred_fallthru
      _
    // Predicated region
    $region6: #{linear_sigmoid_softmax.1} parent=1 // pred_check
      _
    $region7: #{linear_sigmoid_softmax.1} parent=1 // pred_check_branch
      %12 = sbr.rel (0) target = $region9
    $region8: #{linear_sigmoid_softmax.1} parent=1 // pred_region
      _
    $region9: #{linear_sigmoid_softmax.1} parent=1 // pred_fallthru
      _
    // Predicated region
    $region10: #{linear_sigmoid_softmax.1} parent=1 // pred_check
      _
    $region11: #{linear_sigmoid_softmax.1} parent=1 // pred_check_branch
      %14 = sbr.rel (0) target = $region13
    $region12: #{linear_sigmoid_softmax.1} parent=1 // pred_region
      _
    $region13: #{linear_sigmoid_softmax.1} parent=1 // pred_fallthru
      _
    %v15 = vld [vmem:[%s0] sm:$0x1f]
    %v16 = vld [vmem:[%s0 + $0x8] sm:$0x1f]
    %v17 = vld [vmem:[%s0 + $0x10] sm:$0x1f]
    %v18 = vld [vmem:[%s0 + $0x18] sm:$0x1f]
    %v19 = vld [vmem:[%s0 + $0x20] sm:$0x1f]
    %v20 = vld [vmem:[%s0 + $0x28] sm:$0x1f]
    %v21 = vld [vmem:[%s0 + $0x30] sm:$0x1f]
    %v22 = vld [vmem:[%s0 + $0x38] sm:$0x1f]
    %v23 = vld [vmem:[%s0 + $0x40] sm:$0x1f]
    %v24 = vld [vmem:[%s0 + $0x48] sm:$0x1f]
    %v25 = vld [vmem:[%s0 + $0x50] sm:$0x1f]
    %v26 = vld [vmem:[%s0 + $0x58] sm:$0x1f]
    %v27 = vld [vmem:[%s1] sm:$0xff]
    %v28 = vld [vmem:[%s1 + $0x8] sm:$0xff]
    %v29 = vld [vmem:[%s1 + $0x10] sm:$0xff]
    %v30 = vld [vmem:[%s1 + $0x18] sm:$0xff]
    %v31 = vld [vmem:[%s1 + $0x20] sm:$0xff]
    %v32 = vld [vmem:[%s1 + $0x28] sm:$0xff]
    %v33 = vld [vmem:[%s1 + $0x30] sm:$0xff]
    %v34 = vld [vmem:[%s1 + $0x38] sm:$0xff]
    %v35 = vld [vmem:[%s1 + $0x40] sm:$0xff]
    %v36 = vld [vmem:[%s1 + $0x48] sm:$0xff]
    %v37 = vld [vmem:[%s1 + $0x50] sm:$0xff]
    %v38 = vld [vmem:[%s1 + $0x58] sm:$0xff]
    %v39 = vld [vmem:[%s1 + $0x60] sm:$0xff]
    %v40 = vld [vmem:[%s1 + $0x68] sm:$0xff]
    %v41 = vld [vmem:[%s1 + $0x70] sm:$0xff]
    %v42 = vld [vmem:[%s1 + $0x78] sm:$0xff]
    %v43 = vld [vmem:[%s1 + $0x80] sm:$0xff]
    %v44 = vld [vmem:[%s1 + $0x88] sm:$0xff]
    %v45 = vld [vmem:[%s1 + $0x90] sm:$0xff]
    %v46 = vld [vmem:[%s1 + $0x98] sm:$0xff]
    %v47 = vld [vmem:[%s1 + $0xa0] sm:$0xff]
    %v48 = vld [vmem:[%s1 + $0xa8] sm:$0xff]
    %v49 = vld [vmem:[%s1 + $0xb0] sm:$0xff]
    %v50 = vld [vmem:[%s1 + $0xb8] sm:$0xff]
    %v51 = vld [vmem:[%s1 + $0xc0] sm:$0xff]
    %v52 = vld [vmem:[%s1 + $0xc8] sm:$0xff]
    %v53 = vld [vmem:[%s1 + $0xd0] sm:$0xff]
    %v54 = vld [vmem:[%s1 + $0xd8] sm:$0xff]
    %v55 = vld [vmem:[%s1 + $0xe0] sm:$0xff]
    %v56 = vld [vmem:[%s1 + $0xe8] sm:$0xff]
    %v57 = vld [vmem:[%s1 + $0xf0] sm:$0xff]
    %v58 = vld [vmem:[%s1 + $0xf8] sm:$0xff]
    %v59 = vld [vmem:[%s1 + $0x100] sm:$0xff]
    %v60 = vld [vmem:[%s1 + $0x108] sm:$0xff]
    %v61 = vld [vmem:[%s1 + $0x110] sm:$0xff]
    %v62 = vld [vmem:[%s1 + $0x118] sm:$0xff]
    %v63 = vld [vmem:[%s1 + $0x120] sm:$0xff]
    %v64 = vld [vmem:[%s1 + $0x128] sm:$0xff]
    %v65 = vld [vmem:[%s1 + $0x130] sm:$0xff]
    %v66 = vld [vmem:[%s1 + $0x138] sm:$0xff]
    %v67 = vld [vmem:[%s1 + $0x140] sm:$0xff]
    %v68 = vld [vmem:[%s1 + $0x148] sm:$0xff]
    %v69 = vld [vmem:[%s1 + $0x150] sm:$0xff]
    %v70 = vld [vmem:[%s1 + $0x158] sm:$0xff]
    %v71 = vld [vmem:[%s1 + $0x160] sm:$0xff]
    %v72 = vld [vmem:[%s1 + $0x168] sm:$0xff]
    %v73 = vld [vmem:[%s1 + $0x170] sm:$0xff]
    %v74 = vld [vmem:[%s1 + $0x178] sm:$0xff]
    %v75 = vld [vmem:[%s1 + $0x180] sm:$0xff]
    %v76 = vld [vmem:[%s1 + $0x188] sm:$0xff]
    %v77 = vld [vmem:[%s1 + $0x190] sm:$0xff]
    %v78 = vld [vmem:[%s1 + $0x198] sm:$0xff]
    %v79 = vld [vmem:[%s1 + $0x1a0] sm:$0xff]
    %v80 = vld [vmem:[%s1 + $0x1a8] sm:$0xff]
    %v81 = vld [vmem:[%s1 + $0x1b0] sm:$0xff]
    %v82 = vld [vmem:[%s1 + $0x1b8] sm:$0xff]
    %v83 = vld [vmem:[%s1 + $0x1c0] sm:$0xff]
    %v84 = vld [vmem:[%s1 + $0x1c8] sm:$0xff]
    %v85 = vld [vmem:[%s1 + $0x1d0] sm:$0xff]
    %v86 = vld [vmem:[%s1 + $0x1d8] sm:$0xff]
    %v87 = vld [vmem:[%s1 + $0x1e0] sm:$0xff]
    %v88 = vld [vmem:[%s1 + $0x1e8] sm:$0xff]
    %v89 = vld [vmem:[%s1 + $0x1f0] sm:$0xff]
    %v90 = vld [vmem:[%s1 + $0x1f8] sm:$0xff]
    %v91 = vld [vmem:[%s1 + $0x200] sm:$0xff]
    %v92 = vld [vmem:[%s1 + $0x208] sm:$0xff]
    %v93 = vld [vmem:[%s1 + $0x210] sm:$0xff]
    %v94 = vld [vmem:[%s1 + $0x218] sm:$0xff]
    %v95 = vld [vmem:[%s1 + $0x220] sm:$0xff]
    %v96 = vld [vmem:[%s1 + $0x228] sm:$0xff]
    %v97 = vld [vmem:[%s1 + $0x230] sm:$0xff]
    %v98 = vld [vmem:[%s1 + $0x238] sm:$0xff]
    %v99 = vld [vmem:[%s1 + $0x240] sm:$0xff]
    %v100 = vld [vmem:[%s1 + $0x248] sm:$0xff]
    %v101 = vld [vmem:[%s1 + $0x250] sm:$0xff]
    %v102 = vld [vmem:[%s1 + $0x258] sm:$0xff]
    %v103 = vld [vmem:[%s1 + $0x260] sm:$0xff]
    %v104 = vld [vmem:[%s1 + $0x268] sm:$0xff]
    %v105 = vld [vmem:[%s1 + $0x270] sm:$0xff]
    %v106 = vld [vmem:[%s1 + $0x278] sm:$0xff]
    %v107 = vld [vmem:[%s1 + $0x280] sm:$0xff]
    %v108 = vld [vmem:[%s1 + $0x288] sm:$0xff]
    %v109 = vld [vmem:[%s1 + $0x290] sm:$0xff]
    %v110 = vld [vmem:[%s1 + $0x298] sm:$0xff]
    %v111 = vld [vmem:[%s1 + $0x2a0] sm:$0xff]
    %v112 = vld [vmem:[%s1 + $0x2a8] sm:$0xff]
    %v113 = vld [vmem:[%s1 + $0x2b0] sm:$0xff]
    %v114 = vld [vmem:[%s1 + $0x2b8] sm:$0xff]
    %v115 = vld [vmem:[%s1 + $0x2c0] sm:$0xff]
    %v116 = vld [vmem:[%s1 + $0x2c8] sm:$0xff]
    %v117 = vld [vmem:[%s1 + $0x2d0] sm:$0xff]
    %v118 = vld [vmem:[%s1 + $0x2d8] sm:$0xff]
    %v119 = vld [vmem:[%s1 + $0x2e0] sm:$0xff]
    %v120 = vld [vmem:[%s1 + $0x2e8] sm:$0xff]
    %v121 = vld [vmem:[%s1 + $0x2f0] sm:$0xff]
    %v122 = vld [vmem:[%s1 + $0x2f8] sm:$0xff]
    %v123 = vld [vmem:[%s1 + $0x300] sm:$0xff]
    %v124 = vld [vmem:[%s1 + $0x308] sm:$0xff]
    %v125 = vld [vmem:[%s1 + $0x310] sm:$0xff]
    %v126 = vld [vmem:[%s1 + $0x318] sm:$0xff]
    %v127 = vld [vmem:[%s1 + $0x320] sm:$0xff]
    %v128 = vld [vmem:[%s1 + $0x328] sm:$0xff]
    %v129 = vld [vmem:[%s1 + $0x330] sm:$0xff]
    %v130 = vld [vmem:[%s1 + $0x338] sm:$0xff]
    %v131 = vld [vmem:[%s1 + $0x340] sm:$0xff]
    %v132 = vld [vmem:[%s1 + $0x348] sm:$0xff]
    %v133 = vld [vmem:[%s1 + $0x350] sm:$0xff]
    %v134 = vld [vmem:[%s1 + $0x358] sm:$0xff]
    %v135 = vld [vmem:[%s1 + $0x360] sm:$0xff]
    %v136 = vld [vmem:[%s1 + $0x368] sm:$0xff]
    %v137 = vld [vmem:[%s1 + $0x370] sm:$0xff]
    %v138 = vld [vmem:[%s1 + $0x378] sm:$0xff]
    %v139 = vld [vmem:[%s1 + $0x380] sm:$0xff]
    %v140 = vld [vmem:[%s1 + $0x388] sm:$0xff]
    %v141 = vld [vmem:[%s1 + $0x390] sm:$0xff]
    %v142 = vld [vmem:[%s1 + $0x398] sm:$0xff]
    %v143 = vld [vmem:[%s1 + $0x3a0] sm:$0xff]
    %v144 = vld [vmem:[%s1 + $0x3a8] sm:$0xff]
    %v145 = vld [vmem:[%s1 + $0x3b0] sm:$0xff]
    %v146 = vld [vmem:[%s1 + $0x3b8] sm:$0xff]
    %v147 = vld [vmem:[%s1 + $0x3c0] sm:$0xff]
    %v148 = vld [vmem:[%s1 + $0x3c8] sm:$0xff]
    %v149 = vld [vmem:[%s1 + $0x3d0] sm:$0xff]
    %v150 = vld [vmem:[%s1 + $0x3d8] sm:$0xff]
    %v151 = vld [vmem:[%s1 + $0x3e0] sm:$0xff]
    %v152 = vld [vmem:[%s1 + $0x3e8] sm:$0xff]
    %v153 = vld [vmem:[%s1 + $0x3f0] sm:$0xff]
    %v154 = vld [vmem:[%s1 + $0x3f8] sm:$0xff]
    %v155 = vld [vmem:[%s1 + $0x400] sm:$0xff]
    %v156 = vld [vmem:[%s1 + $0x408] sm:$0xff]
    %v157 = vld [vmem:[%s1 + $0x410] sm:$0xff]
    %v158 = vld [vmem:[%s1 + $0x418] sm:$0xff]
    %v159 = vld [vmem:[%s1 + $0x420] sm:$0xff]
    %v160 = vld [vmem:[%s1 + $0x428] sm:$0xff]
    %v161 = vld [vmem:[%s1 + $0x430] sm:$0xff]
    %v162 = vld [vmem:[%s1 + $0x438] sm:$0xff]
    %v163 = vld [vmem:[%s1 + $0x440] sm:$0xff]
    %v164 = vld [vmem:[%s1 + $0x448] sm:$0xff]
    %v165 = vld [vmem:[%s1 + $0x450] sm:$0xff]
    %v166 = vld [vmem:[%s1 + $0x458] sm:$0xff]
    %v167 = vld [vmem:[%s1 + $0x460] sm:$0xff]
    %v168 = vld [vmem:[%s1 + $0x468] sm:$0xff]
    %v169 = vld [vmem:[%s1 + $0x470] sm:$0xff]
    %v170 = vld [vmem:[%s1 + $0x478] sm:$0xff]
    %v171 = vld [vmem:[%s1 + $0x480] sm:$0xff]
    %v172 = vld [vmem:[%s1 + $0x488] sm:$0xff]
    %v173 = vld [vmem:[%s1 + $0x490] sm:$0xff]
    %v174 = vld [vmem:[%s1 + $0x498] sm:$0xff]
    %v175 = vld [vmem:[%s1 + $0x4a0] sm:$0xff]
    %v176 = vld [vmem:[%s1 + $0x4a8] sm:$0xff]
    %v177 = vld [vmem:[%s1 + $0x4b0] sm:$0xff]
    %v178 = vld [vmem:[%s1 + $0x4b8] sm:$0xff]
    %v179 = vld [vmem:[%s1 + $0x4c0] sm:$0xff]
    %v180 = vld [vmem:[%s1 + $0x4c8] sm:$0xff]
    %v181 = vld [vmem:[%s1 + $0x4d0] sm:$0xff]
    %v182 = vld [vmem:[%s1 + $0x4d8] sm:$0xff]
    %v183 = vld [vmem:[%s1 + $0x4e0] sm:$0xff]
    %v184 = vld [vmem:[%s1 + $0x4e8] sm:$0xff]
    %v185 = vld [vmem:[%s1 + $0x4f0] sm:$0xff]
    %v186 = vld [vmem:[%s1 + $0x4f8] sm:$0xff]
    %v187 = vld [vmem:[%s1 + $0x500] sm:$0xff]
    %v188 = vld [vmem:[%s1 + $0x508] sm:$0xff]
    %v189 = vld [vmem:[%s1 + $0x510] sm:$0xff]
    %v190 = vld [vmem:[%s1 + $0x518] sm:$0xff]
    %v191 = vld [vmem:[%s1 + $0x520] sm:$0xff]
    %v192 = vld [vmem:[%s1 + $0x528] sm:$0xff]
    %v193 = vld [vmem:[%s1 + $0x530] sm:$0xff]
    %v194 = vld [vmem:[%s1 + $0x538] sm:$0xff]
    %v195 = vld [vmem:[%s1 + $0x540] sm:$0xff]
    %v196 = vld [vmem:[%s1 + $0x548] sm:$0xff]
    %v197 = vld [vmem:[%s1 + $0x550] sm:$0xff]
    %v198 = vld [vmem:[%s1 + $0x558] sm:$0xff]
    %v199 = vld [vmem:[%s1 + $0x560] sm:$0xff]
    %v200 = vld [vmem:[%s1 + $0x568] sm:$0xff]
    %v201 = vld [vmem:[%s1 + $0x570] sm:$0xff]
    %v202 = vld [vmem:[%s1 + $0x578] sm:$0xff]
    %v203 = vld [vmem:[%s1 + $0x580] sm:$0xff]
    %v204 = vld [vmem:[%s1 + $0x588] sm:$0xff]
    %v205 = vld [vmem:[%s1 + $0x590] sm:$0xff]
    %v206 = vld [vmem:[%s1 + $0x598] sm:$0xff]
    %v207 = vld [vmem:[%s1 + $0x5a0] sm:$0xff]
    %v208 = vld [vmem:[%s1 + $0x5a8] sm:$0xff]
    %v209 = vld [vmem:[%s1 + $0x5b0] sm:$0xff]
    %v210 = vld [vmem:[%s1 + $0x5b8] sm:$0xff]
    %v211 = vld [vmem:[%s1 + $0x5c0] sm:$0xff]
    %v212 = vld [vmem:[%s1 + $0x5c8] sm:$0xff]
    %v213 = vld [vmem:[%s1 + $0x5d0] sm:$0xff]
    %v214 = vld [vmem:[%s1 + $0x5d8] sm:$0xff]
    %v215 = vld [vmem:[%s1 + $0x5e0] sm:$0xff]
    %v216 = vld [vmem:[%s1 + $0x5e8] sm:$0xff]
    %v217 = vld [vmem:[%s1 + $0x5f0] sm:$0xff]
    %v218 = vld [vmem:[%s1 + $0x5f8] sm:$0xff]
    %v219 = vld [vmem:[%s2] sm:$0x1]
    %v221 = vlaneseq
    %v222 = vshrl.u32 %v221, 7
    %v223 = vsub.s32 0, %v222
    %v224 = vrot.slane %v219, %v223
    %226 = vmatprep.subr.mxu0 0.0
    %227 = vmatpush1.msra.mxu0 %v27
    %228 = vmatprep.subr.mxu0 0.0
    %229 = vmatpush1.msra.mxu0 %v28
    %230 = vmatprep.subr.mxu0 0.0
    %231 = vmatpush1.msra.mxu0 %v29
    %232 = vmatprep.subr.mxu0 0.0
    %233 = vmatpush1.msra.mxu0 %v30
    %234 = vmatprep.subr.mxu0 0.0
    %235 = vmatpush1.msra.mxu0 %v31
    %236 = vmatprep.subr.mxu0 0.0
    %237 = vmatpush1.msra.mxu0 %v32
    %238 = vmatprep.subr.mxu0 0.0
    %239 = vmatpush1.msra.mxu0 %v33
    %240 = vmatprep.subr.mxu0 0.0
    %241 = vmatpush1.msra.mxu0 %v34
    %242 = vmatprep.subr.mxu0 0.0
    %243 = vmatpush1.msra.mxu0 %v35
    %244 = vmatprep.subr.mxu0 0.0
    %245 = vmatpush1.msra.mxu0 %v36
    %246 = vmatprep.subr.mxu0 0.0
    %247 = vmatpush1.msra.mxu0 %v37
    %248 = vmatprep.subr.mxu0 0.0
    %249 = vmatpush1.msra.mxu0 %v38
    %250 = vmatprep.subr.mxu0 0.0
    %251 = vmatpush1.msra.mxu0 %v39
    %252 = vmatprep.subr.mxu0 0.0
    %253 = vmatpush1.msra.mxu0 %v40
    %254 = vmatprep.subr.mxu0 0.0
    %255 = vmatpush1.msra.mxu0 %v41
    %256 = vmatprep.subr.mxu0 0.0
    %257 = vmatpush1.msra.mxu0 %v42
    %258 = vmatprep.subr.mxu0 0.0
    %259 = vmatpush1.msra.mxu0 %v43
    %260 = vmatprep.subr.mxu0 0.0
    %261 = vmatpush1.msra.mxu0 %v44
    %262 = vmatprep.subr.mxu0 0.0
    %263 = vmatpush1.msra.mxu0 %v45
    %264 = vmatprep.subr.mxu0 0.0
    %265 = vmatpush1.msra.mxu0 %v46
    %266 = vmatprep.subr.mxu0 0.0
    %267 = vmatpush1.msra.mxu0 %v47
    %268 = vmatprep.subr.mxu0 0.0
    %269 = vmatpush1.msra.mxu0 %v48
    %270 = vmatprep.subr.mxu0 0.0
    %271 = vmatpush1.msra.mxu0 %v49
    %272 = vmatprep.subr.mxu0 0.0
    %273 = vmatpush1.msra.mxu0 %v50
    %274 = vmatprep.subr.mxu0 0.0
    %275 = vmatpush1.msra.mxu0 %v51
    %276 = vmatprep.subr.mxu0 0.0
    %277 = vmatpush1.msra.mxu0 %v52
    %278 = vmatprep.subr.mxu0 0.0
    %279 = vmatpush1.msra.mxu0 %v53
    %280 = vmatprep.subr.mxu0 0.0
    %281 = vmatpush1.msra.mxu0 %v54
    %282 = vmatprep.subr.mxu0 0.0
    %283 = vmatpush1.msra.mxu0 %v55
    %284 = vmatprep.subr.mxu0 0.0
    %285 = vmatpush1.msra.mxu0 %v56
    %286 = vmatprep.subr.mxu0 0.0
    %287 = vmatpush1.msra.mxu0 %v57
    %288 = vmatprep.subr.mxu0 0.0
    %289 = vmatpush1.msra.mxu0 %v58
    %290 = vmatprep.mubr.f32.mxu0 %v16
    %291 = vmatmul.mubr.f32.gmra.mrb[0].mxu0 %v15
    %v292 = vpop.f32.mrb[0].mxu0
    %v293 = vadd.f32 %v224, %v292
    %v294 = vpop.f32.mrb[0].mxu0
    %295 = vdwg.mxu0
    %296 = vmatprep.subr.mxu0 0.0
    %297 = vmatpush1.msra.mxu0 %v59
    %298 = vmatprep.subr.mxu0 0.0
    %299 = vmatpush1.msra.mxu0 %v60
    %300 = vmatprep.subr.mxu0 0.0
    %301 = vmatpush1.msra.mxu0 %v61
    %302 = vmatprep.subr.mxu0 0.0
    %303 = vmatpush1.msra.mxu0 %v62
    %304 = vmatprep.subr.mxu0 0.0
    %305 = vmatpush1.msra.mxu0 %v63
    %306 = vmatprep.subr.mxu0 0.0
    %307 = vmatpush1.msra.mxu0 %v64
    %308 = vmatprep.subr.mxu0 0.0
    %309 = vmatpush1.msra.mxu0 %v65
    %310 = vmatprep.subr.mxu0 0.0
    %311 = vmatpush1.msra.mxu0 %v66
    %312 = vmatprep.subr.mxu0 0.0
    %313 = vmatpush1.msra.mxu0 %v67
    %314 = vmatprep.subr.mxu0 0.0
    %315 = vmatpush1.msra.mxu0 %v68
    %316 = vmatprep.subr.mxu0 0.0
    %317 = vmatpush1.msra.mxu0 %v69
    %318 = vmatprep.subr.mxu0 0.0
    %319 = vmatpush1.msra.mxu0 %v70
    %320 = vmatprep.subr.mxu0 0.0
    %321 = vmatpush1.msra.mxu0 %v71
    %322 = vmatprep.subr.mxu0 0.0
    %323 = vmatpush1.msra.mxu0 %v72
    %324 = vmatprep.subr.mxu0 0.0
    %325 = vmatpush1.msra.mxu0 %v73
    %326 = vmatprep.subr.mxu0 0.0
    %327 = vmatpush1.msra.mxu0 %v74
    %328 = vmatprep.subr.mxu0 0.0
    %329 = vmatpush1.msra.mxu0 %v75
    %330 = vmatprep.subr.mxu0 0.0
    %331 = vmatpush1.msra.mxu0 %v76
    %332 = vmatprep.subr.mxu0 0.0
    %333 = vmatpush1.msra.mxu0 %v77
    %334 = vmatprep.subr.mxu0 0.0
    %335 = vmatpush1.msra.mxu0 %v78
    %336 = vmatprep.subr.mxu0 0.0
    %337 = vmatpush1.msra.mxu0 %v79
    %338 = vmatprep.subr.mxu0 0.0
    %339 = vmatpush1.msra.mxu0 %v80
    %340 = vmatprep.subr.mxu0 0.0
    %341 = vmatpush1.msra.mxu0 %v81
    %342 = vmatprep.subr.mxu0 0.0
    %343 = vmatpush1.msra.mxu0 %v82
    %344 = vmatprep.subr.mxu0 0.0
    %345 = vmatpush1.msra.mxu0 %v83
    %346 = vmatprep.subr.mxu0 0.0
    %347 = vmatpush1.msra.mxu0 %v84
    %348 = vmatprep.subr.mxu0 0.0
    %349 = vmatpush1.msra.mxu0 %v85
    %350 = vmatprep.subr.mxu0 0.0
    %351 = vmatpush1.msra.mxu0 %v86
    %352 = vmatprep.subr.mxu0 0.0
    %353 = vmatpush1.msra.mxu0 %v87
    %354 = vmatprep.subr.mxu0 0.0
    %355 = vmatpush1.msra.mxu0 %v88
    %356 = vmatprep.subr.mxu0 0.0
    %357 = vmatpush1.msra.mxu0 %v89
    %358 = vmatprep.subr.mxu0 0.0
    %359 = vmatpush1.msra.mxu0 %v90
    %360 = vmatprep.mubr.f32.mxu0 %v18
    %361 = vmatmul.mubr.f32.gmra.mrb[0].mxu0 %v17
    %v362 = vpop.f32.mrb[0].mxu0
    %v363 = vadd.f32 %v293, %v362
    %v364 = vpop.f32.mrb[0].mxu0
    %365 = vdwg.mxu0
    %366 = vmatprep.subr.mxu0 0.0
    %367 = vmatpush1.msra.mxu0 %v91
    %368 = vmatprep.subr.mxu0 0.0
    %369 = vmatpush1.msra.mxu0 %v92
    %370 = vmatprep.subr.mxu0 0.0
    %371 = vmatpush1.msra.mxu0 %v93
    %372 = vmatprep.subr.mxu0 0.0
    %373 = vmatpush1.msra.mxu0 %v94
    %374 = vmatprep.subr.mxu0 0.0
    %375 = vmatpush1.msra.mxu0 %v95
    %376 = vmatprep.subr.mxu0 0.0
    %377 = vmatpush1.msra.mxu0 %v96
    %378 = vmatprep.subr.mxu0 0.0
    %379 = vmatpush1.msra.mxu0 %v97
    %380 = vmatprep.subr.mxu0 0.0
    %381 = vmatpush1.msra.mxu0 %v98
    %382 = vmatprep.subr.mxu0 0.0
    %383 = vmatpush1.msra.mxu0 %v99
    %384 = vmatprep.subr.mxu0 0.0
    %385 = vmatpush1.msra.mxu0 %v100
    %386 = vmatprep.subr.mxu0 0.0
    %387 = vmatpush1.msra.mxu0 %v101
    %388 = vmatprep.subr.mxu0 0.0
    %389 = vmatpush1.msra.mxu0 %v102
    %390 = vmatprep.subr.mxu0 0.0
    %391 = vmatpush1.msra.mxu0 %v103
    %392 = vmatprep.subr.mxu0 0.0
    %393 = vmatpush1.msra.mxu0 %v104
    %394 = vmatprep.subr.mxu0 0.0
    %395 = vmatpush1.msra.mxu0 %v105
    %396 = vmatprep.subr.mxu0 0.0
    %397 = vmatpush1.msra.mxu0 %v106
    %398 = vmatprep.subr.mxu0 0.0
    %399 = vmatpush1.msra.mxu0 %v107
    %400 = vmatprep.subr.mxu0 0.0
    %401 = vmatpush1.msra.mxu0 %v108
    %402 = vmatprep.subr.mxu0 0.0
    %403 = vmatpush1.msra.mxu0 %v109
    %404 = vmatprep.subr.mxu0 0.0
    %405 = vmatpush1.msra.mxu0 %v110
    %406 = vmatprep.subr.mxu0 0.0
    %407 = vmatpush1.msra.mxu0 %v111
    %408 = vmatprep.subr.mxu0 0.0
    %409 = vmatpush1.msra.mxu0 %v112
    %410 = vmatprep.subr.mxu0 0.0
    %411 = vmatpush1.msra.mxu0 %v113
    %412 = vmatprep.subr.mxu0 0.0
    %413 = vmatpush1.msra.mxu0 %v114
    %414 = vmatprep.subr.mxu0 0.0
    %415 = vmatpush1.msra.mxu0 %v115
    %416 = vmatprep.subr.mxu0 0.0
    %417 = vmatpush1.msra.mxu0 %v116
    %418 = vmatprep.subr.mxu0 0.0
    %419 = vmatpush1.msra.mxu0 %v117
    %420 = vmatprep.subr.mxu0 0.0
    %421 = vmatpush1.msra.mxu0 %v118
    %422 = vmatprep.subr.mxu0 0.0
    %423 = vmatpush1.msra.mxu0 %v119
    %424 = vmatprep.subr.mxu0 0.0
    %425 = vmatpush1.msra.mxu0 %v120
    %426 = vmatprep.subr.mxu0 0.0
    %427 = vmatpush1.msra.mxu0 %v121
    %428 = vmatprep.subr.mxu0 0.0
    %429 = vmatpush1.msra.mxu0 %v122
    %430 = vmatprep.mubr.f32.mxu0 %v20
    %431 = vmatmul.mubr.f32.gmra.mrb[0].mxu0 %v19
    %v432 = vpop.f32.mrb[0].mxu0
    %v433 = vadd.f32 %v363, %v432
    %v434 = vpop.f32.mrb[0].mxu0
    %435 = vdwg.mxu0
    %436 = vmatprep.subr.mxu0 0.0
    %437 = vmatpush1.msra.mxu0 %v123
    %438 = vmatprep.subr.mxu0 0.0
    %439 = vmatpush1.msra.mxu0 %v124
    %440 = vmatprep.subr.mxu0 0.0
    %441 = vmatpush1.msra.mxu0 %v125
    %442 = vmatprep.subr.mxu0 0.0
    %443 = vmatpush1.msra.mxu0 %v126
    %444 = vmatprep.subr.mxu0 0.0
    %445 = vmatpush1.msra.mxu0 %v127
    %446 = vmatprep.subr.mxu0 0.0
    %447 = vmatpush1.msra.mxu0 %v128
    %448 = vmatprep.subr.mxu0 0.0
    %449 = vmatpush1.msra.mxu0 %v129
    %450 = vmatprep.subr.mxu0 0.0
    %451 = vmatpush1.msra.mxu0 %v130
    %452 = vmatprep.subr.mxu0 0.0
    %453 = vmatpush1.msra.mxu0 %v131
    %454 = vmatprep.subr.mxu0 0.0
    %455 = vmatpush1.msra.mxu0 %v132
    %456 = vmatprep.subr.mxu0 0.0
    %457 = vmatpush1.msra.mxu0 %v133
    %458 = vmatprep.subr.mxu0 0.0
    %459 = vmatpush1.msra.mxu0 %v134
    %460 = vmatprep.subr.mxu0 0.0
    %461 = vmatpush1.msra.mxu0 %v135
    %462 = vmatprep.subr.mxu0 0.0
    %463 = vmatpush1.msra.mxu0 %v136
    %464 = vmatprep.subr.mxu0 0.0
    %465 = vmatpush1.msra.mxu0 %v137
    %466 = vmatprep.subr.mxu0 0.0
    %467 = vmatpush1.msra.mxu0 %v138
    %468 = vmatprep.subr.mxu0 0.0
    %469 = vmatpush1.msra.mxu0 %v139
    %470 = vmatprep.subr.mxu0 0.0
    %471 = vmatpush1.msra.mxu0 %v140
    %472 = vmatprep.subr.mxu0 0.0
    %473 = vmatpush1.msra.mxu0 %v141
    %474 = vmatprep.subr.mxu0 0.0
    %475 = vmatpush1.msra.mxu0 %v142
    %476 = vmatprep.subr.mxu0 0.0
    %477 = vmatpush1.msra.mxu0 %v143
    %478 = vmatprep.subr.mxu0 0.0
    %479 = vmatpush1.msra.mxu0 %v144
    %480 = vmatprep.subr.mxu0 0.0
    %481 = vmatpush1.msra.mxu0 %v145
    %482 = vmatprep.subr.mxu0 0.0
    %483 = vmatpush1.msra.mxu0 %v146
    %484 = vmatprep.subr.mxu0 0.0
    %485 = vmatpush1.msra.mxu0 %v147
    %486 = vmatprep.subr.mxu0 0.0
    %487 = vmatpush1.msra.mxu0 %v148
    %488 = vmatprep.subr.mxu0 0.0
    %489 = vmatpush1.msra.mxu0 %v149
    %490 = vmatprep.subr.mxu0 0.0
    %491 = vmatpush1.msra.mxu0 %v150
    %492 = vmatprep.subr.mxu0 0.0
    %493 = vmatpush1.msra.mxu0 %v151
    %494 = vmatprep.subr.mxu0 0.0
    %495 = vmatpush1.msra.mxu0 %v152
    %496 = vmatprep.subr.mxu0 0.0
    %497 = vmatpush1.msra.mxu0 %v153
    %498 = vmatprep.subr.mxu0 0.0
    %499 = vmatpush1.msra.mxu0 %v154
    %500 = vmatprep.mubr.f32.mxu0 %v22
    %501 = vmatmul.mubr.f32.gmra.mrb[0].mxu0 %v21
    %v502 = vpop.f32.mrb[0].mxu0
    %v503 = vadd.f32 %v433, %v502
    %v504 = vpop.f32.mrb[0].mxu0
    %505 = vdwg.mxu0
    %506 = vmatprep.subr.mxu0 0.0
    %507 = vmatpush1.msra.mxu0 %v155
    %508 = vmatprep.subr.mxu0 0.0
    %509 = vmatpush1.msra.mxu0 %v156
    %510 = vmatprep.subr.mxu0 0.0
    %511 = vmatpush1.msra.mxu0 %v157
    %512 = vmatprep.subr.mxu0 0.0
    %513 = vmatpush1.msra.mxu0 %v158
    %514 = vmatprep.subr.mxu0 0.0
    %515 = vmatpush1.msra.mxu0 %v159
    %516 = vmatprep.subr.mxu0 0.0
    %517 = vmatpush1.msra.mxu0 %v160
    %518 = vmatprep.subr.mxu0 0.0
    %519 = vmatpush1.msra.mxu0 %v161
    %520 = vmatprep.subr.mxu0 0.0
    %521 = vmatpush1.msra.mxu0 %v162
    %522 = vmatprep.subr.mxu0 0.0
    %523 = vmatpush1.msra.mxu0 %v163
    %524 = vmatprep.subr.mxu0 0.0
    %525 = vmatpush1.msra.mxu0 %v164
    %526 = vmatprep.subr.mxu0 0.0
    %527 = vmatpush1.msra.mxu0 %v165
    %528 = vmatprep.subr.mxu0 0.0
    %529 = vmatpush1.msra.mxu0 %v166
    %530 = vmatprep.subr.mxu0 0.0
    %531 = vmatpush1.msra.mxu0 %v167
    %532 = vmatprep.subr.mxu0 0.0
    %533 = vmatpush1.msra.mxu0 %v168
    %534 = vmatprep.subr.mxu0 0.0
    %535 = vmatpush1.msra.mxu0 %v169
    %536 = vmatprep.subr.mxu0 0.0
    %537 = vmatpush1.msra.mxu0 %v170
    %538 = vmatprep.subr.mxu0 0.0
    %539 = vmatpush1.msra.mxu0 %v171
    %540 = vmatprep.subr.mxu0 0.0
    %541 = vmatpush1.msra.mxu0 %v172
    %542 = vmatprep.subr.mxu0 0.0
    %543 = vmatpush1.msra.mxu0 %v173
    %544 = vmatprep.subr.mxu0 0.0
    %545 = vmatpush1.msra.mxu0 %v174
    %546 = vmatprep.subr.mxu0 0.0
    %547 = vmatpush1.msra.mxu0 %v175
    %548 = vmatprep.subr.mxu0 0.0
    %549 = vmatpush1.msra.mxu0 %v176
    %550 = vmatprep.subr.mxu0 0.0
    %551 = vmatpush1.msra.mxu0 %v177
    %552 = vmatprep.subr.mxu0 0.0
    %553 = vmatpush1.msra.mxu0 %v178
    %554 = vmatprep.subr.mxu0 0.0
    %555 = vmatpush1.msra.mxu0 %v179
    %556 = vmatprep.subr.mxu0 0.0
    %557 = vmatpush1.msra.mxu0 %v180
    %558 = vmatprep.subr.mxu0 0.0
    %559 = vmatpush1.msra.mxu0 %v181
    %560 = vmatprep.subr.mxu0 0.0
    %561 = vmatpush1.msra.mxu0 %v182
    %562 = vmatprep.subr.mxu0 0.0
    %563 = vmatpush1.msra.mxu0 %v183
    %564 = vmatprep.subr.mxu0 0.0
    %565 = vmatpush1.msra.mxu0 %v184
    %566 = vmatprep.subr.mxu0 0.0
    %567 = vmatpush1.msra.mxu0 %v185
    %568 = vmatprep.subr.mxu0 0.0
    %569 = vmatpush1.msra.mxu0 %v186
    %570 = vmatprep.mubr.f32.mxu0 %v24
    %571 = vmatmul.mubr.f32.gmra.mrb[0].mxu0 %v23
    %v572 = vpop.f32.mrb[0].mxu0
    %v573 = vadd.f32 %v503, %v572
    %v574 = vpop.f32.mrb[0].mxu0
    %575 = vdwg.mxu0
    %576 = vmatprep.subr.mxu0 0.0
    %577 = vmatpush1.msra.mxu0 %v187
    %578 = vmatprep.subr.mxu0 0.0
    %579 = vmatpush1.msra.mxu0 %v188
    %580 = vmatprep.subr.mxu0 0.0
    %581 = vmatpush1.msra.mxu0 %v189
    %582 = vmatprep.subr.mxu0 0.0
    %583 = vmatpush1.msra.mxu0 %v190
    %584 = vmatprep.subr.mxu0 0.0
    %585 = vmatpush1.msra.mxu0 %v191
    %586 = vmatprep.subr.mxu0 0.0
    %587 = vmatpush1.msra.mxu0 %v192
    %588 = vmatprep.subr.mxu0 0.0
    %589 = vmatpush1.msra.mxu0 %v193
    %590 = vmatprep.subr.mxu0 0.0
    %591 = vmatpush1.msra.mxu0 %v194
    %592 = vmatprep.subr.mxu0 0.0
    %593 = vmatpush1.msra.mxu0 %v195
    %594 = vmatprep.subr.mxu0 0.0
    %595 = vmatpush1.msra.mxu0 %v196
    %596 = vmatprep.subr.mxu0 0.0
    %597 = vmatpush1.msra.mxu0 %v197
    %598 = vmatprep.subr.mxu0 0.0
    %599 = vmatpush1.msra.mxu0 %v198
    %600 = vmatprep.subr.mxu0 0.0
    %601 = vmatpush1.msra.mxu0 %v199
    %602 = vmatprep.subr.mxu0 0.0
    %603 = vmatpush1.msra.mxu0 %v200
    %604 = vmatprep.subr.mxu0 0.0
    %605 = vmatpush1.msra.mxu0 %v201
    %606 = vmatprep.subr.mxu0 0.0
    %607 = vmatpush1.msra.mxu0 %v202
    %608 = vmatprep.subr.mxu0 0.0
    %609 = vmatpush1.msra.mxu0 %v203
    %610 = vmatprep.subr.mxu0 0.0
    %611 = vmatpush1.msra.mxu0 %v204
    %612 = vmatprep.subr.mxu0 0.0
    %613 = vmatpush1.msra.mxu0 %v205
    %614 = vmatprep.subr.mxu0 0.0
    %615 = vmatpush1.msra.mxu0 %v206
    %616 = vmatprep.subr.mxu0 0.0
    %617 = vmatpush1.msra.mxu0 %v207
    %618 = vmatprep.subr.mxu0 0.0
    %619 = vmatpush1.msra.mxu0 %v208
    %620 = vmatprep.subr.mxu0 0.0
    %621 = vmatpush1.msra.mxu0 %v209
    %622 = vmatprep.subr.mxu0 0.0
    %623 = vmatpush1.msra.mxu0 %v210
    %624 = vmatprep.subr.mxu0 0.0
    %625 = vmatpush1.msra.mxu0 %v211
    %626 = vmatprep.subr.mxu0 0.0
    %627 = vmatpush1.msra.mxu0 %v212
    %628 = vmatprep.subr.mxu0 0.0
    %629 = vmatpush1.msra.mxu0 %v213
    %630 = vmatprep.subr.mxu0 0.0
    %631 = vmatpush1.msra.mxu0 %v214
    %632 = vmatprep.subr.mxu0 0.0
    %633 = vmatpush1.msra.mxu0 %v215
    %634 = vmatprep.subr.mxu0 0.0
    %635 = vmatpush1.msra.mxu0 %v216
    %636 = vmatprep.subr.mxu0 0.0
    %637 = vmatpush1.msra.mxu0 %v217
    %638 = vmatprep.subr.mxu0 0.0
    %639 = vmatpush1.msra.mxu0 %v218
    %640 = vmatprep.mubr.f32.mxu0 %v26
    %641 = vmatmul.mubr.f32.gmra.mrb[0].mxu0 %v25
    %v642 = vpop.f32.mrb[0].mxu0
    %v643 = vadd.f32 %v573, %v642
    %v644 = vpop.f32.mrb[0].mxu0
    %645 = vdwg.mxu0
    %v646 = vxor.u32 %v643, 2147483648
    %v647 = vmul.f32 %v646, 1.442695
    %v648 = vpow.pop %v647
    %v649 = vadd.f32 %v648, 1.0
    %v650 = vrcp.pop %v649
    %v651 = vmul.f32 1.0, %v650
    %v652 = vmul.f32 %v651, 1.442695
    %v653 = vpow.pop %v652
    %vm654 = vcmask 77824
    %v655 = vsel %vm654, %v653, 0.0
    %v656 = vrot.slane %v655, 4
    %v657 = vadd.f32 %v655, %v656
    %v658 = vrot.slane %v657, 2
    %v659 = vadd.f32 %v657, %v658
    %v660 = vrot.slane %v659, 1
    %v661 = vadd.f32 %v659, %v660
    %v662 = vrcp.pop %v661
    %v663 = vmul.f32 %v653, %v662
    %664 = vst.msk [vmem:[#allocation2] sm:$0x1f] %vm654, %v663
    // Predicated region
    $region14: #{linear_sigmoid_softmax.1} parent=1 // pred_check
      _
    $region15: #{linear_sigmoid_softmax.1} parent=1 // pred_check_branch
      %666 = sbr.rel (0) target = $region17
    $region16: #{linear_sigmoid_softmax.1} parent=1 // pred_region
      %s668 = ssub.s32 128, 128
      %669 = vsyncadd [#allocation3], %s668
      %s671 = sshll.u32 [#allocation2], 4
      %s672 = int_to_ptr.vmem [resolvable:$true] %s671
      %674 = dma.vmem_to_hbm [thread:$0]  %s672, 128, %s3, [#allocation3]
    $region17: #{linear_sigmoid_softmax.1} parent=1 // pred_fallthru
      _
    // Predicated region
    $region18: #{linear_sigmoid_softmax.1} parent=1 // pred_check
      _
    $region19: #{linear_sigmoid_softmax.1} parent=1 // pred_check_branch
      %676 = sbr.rel (0) target = $region21
    $region20: #{linear_sigmoid_softmax.1} parent=1 // pred_region
      %677 = dma.done [#allocation3], 128
    $region21: #{linear_sigmoid_softmax.1} parent=1 // pred_fallthru
      _
    %678 = vsyncpa [#allocation3], 1

</llo_original>
